<compile_context>
chip_gen: v6e
topology: v6e:2x2x1
jax: 0.10.0
libtpu: 0.0.40
codegen_flags: <defaults>
</compile_context>

<pallas_src>
import functools
import math

import jax
import jax.numpy as jnp
from jax import lax
from jax.experimental import pallas as pl
from jax.experimental.pallas import tpu as pltpu


# ----------------------------------------------------------------------------
# Small host-side helpers
# ----------------------------------------------------------------------------
def _round_up(a, b):
    return pl.cdiv(a, b) * b


def _vmem_capacity_bytes():
    """Generation-aware VMEM capacity (falls back to the smallest, v7x-sized)."""
    try:
        info = pltpu.get_tpu_info()
        cap = getattr(info, "vmem_capacity_bytes", None)
        if cap:
            return int(cap)
    except Exception:
        pass
    return 64 << 20


def _pick_strip(m, cf):
    """Largest power-of-two strip (<= 512 rows, <= ~1 MiB f32) dividing m."""
    cap_rows = max(8, ((1 << 20) // (cf * 4)) // 8 * 8)
    for cand in (512, 256, 128, 64, 32, 16, 8):
        if cand <= cap_rows and cand <= m and m % cand == 0:
            return cand
    return min(m, 8)


# ----------------------------------------------------------------------------
# Kernels
# ----------------------------------------------------------------------------
def _grn_slab_kernel(x_ref, gamma_ref, beta_ref, *rest, fold, strip):
    """Single-slab GRN: one batch element per grid step.

    x_ref    : (M, Cf) lane-dense view of (H*W, C), Cf = fold * C
    gamma_ref: (1, C)  f32
    beta_ref : (1, Cf) f32 (beta pre-tiled `fold` times)
    gather   : (Cf, C) one-hot fold-reduce      (only when fold > 1)
    scatter  : (C, Cf) one-hot fold-broadcast   (only when fold > 1)
    o_ref    : (M, Cf)
    """
    if fold > 1:
        gather_ref, scatter_ref, o_ref = rest
    else:
        gather_ref = scatter_ref = None
        (o_ref,) = rest

    m, cf = x_ref.shape
    nstrips = m // strip
    unroll = nstrips <= 8

    # ---- Gx^2: strip-mined sum of squares over rows, f32 accumulation ------
    def ssq_body(i, acc):
        r0 = pl.multiple_of(i * strip, strip)
        xs = x_ref[pl.ds(r0, strip), :].astype(jnp.float32)
        return acc + jnp.sum(xs * xs, axis=0, keepdims=True)

    ssq_f = lax.fori_loop(0, nstrips, ssq_body,
                          jnp.zeros((1, cf), jnp.float32), unroll=unroll)

    if fold > 1:
        # Fold the interleaved spatial copies of each channel back together.
        ssq_c = jnp.dot(ssq_f, gather_ref[...],
                        preferred_element_type=jnp.float32)          # (1, C)
    else:
        ssq_c = ssq_f

    # ---- Nx = Gx / (mean_C(Gx) + eps); fused scale = gamma*Nx + 1 ----------
    gx = jnp.sqrt(ssq_c)                                             # (1, C)
    denom = jnp.mean(gx, axis=-1, keepdims=True) + 1e-6              # (1, 1)
    inv = pl.reciprocal(denom, approx=True)                          # EUP slot
    inv = inv * (2.0 - denom * inv)                                  # Newton refine
    scale_c = gamma_ref[...] * (gx * inv) + 1.0                      # (1, C)
    if fold > 1:
        scale_f = jnp.dot(scale_c, scatter_ref[...],
                          preferred_element_type=jnp.float32)        # (1, Cf)
    else:
        scale_f = scale_c

    # Hoist broadcasts out of the strip loop (JAX does not CSE broadcast_in_dim).
    scale_b = jnp.broadcast_to(scale_f, (strip, cf))
    beta_b = jnp.broadcast_to(beta_ref[...], (strip, cf))

    # ---- epilogue: y = x*scale + beta (f32 math, cast only on the store) ----
    def apply_body(i, carry):
        r0 = pl.multiple_of(i * strip, strip)
        xs = x_ref[pl.ds(r0, strip), :].astype(jnp.float32)
        o_ref[pl.ds(r0, strip), :] = (xs * scale_b + beta_b).astype(o_ref.dtype)
        return carry

    lax.fori_loop(0, nstrips, apply_body, 0, unroll=unroll)


def _grn_ssq_kernel(x_ref, *rest, fold):
    """Two-pass fallback, pass 1: accumulate per-(batch, channel) sum of squares."""
    if fold > 1:
        gather_ref, ssq_ref = rest
    else:
        gather_ref = None
        (ssq_ref,) = rest

    @pl.when(pl.program_id(1) == 0)
    def _():
        ssq_ref[...] = jnp.zeros_like(ssq_ref)

    xs = x_ref[...].astype(jnp.float32)                              # (tm, Cf)
    ssq_f = jnp.sum(xs * xs, axis=0, keepdims=True)                  # (1, Cf)
    if fold > 1:
        ssq_f = jnp.dot(ssq_f, gather_ref[...],
                        preferred_element_type=jnp.float32)          # (1, C)
    ssq_ref[...] += ssq_f


def _grn_apply_kernel(x_ref, scale_ref, beta_ref, o_ref):
    """Two-pass fallback, pass 2: y = x * scale + beta (f32 math, cast on store)."""
    xf = x_ref[...].astype(jnp.float32)
    o_ref[...] = (xf * scale_ref[...] + beta_ref[...]).astype(o_ref.dtype)


# ----------------------------------------------------------------------------
# pallas_call builders
# ----------------------------------------------------------------------------
def _grn_single_slab(x_fold, gamma_c, beta_f, gather, scatter, *, fold, strip,
                     buf_in, buf_out, vmem_limit):
    N, m, cf = x_fold.shape
    C = gamma_c.shape[-1]
    itemsize = x_fold.dtype.itemsize

    def slab_spec(nbuf):
        kwargs = {}
        if nbuf != 2:
            # Tight-VMEM tier (v7x): drop pipelining depth on the big slab; the
            # kernel is HBM-bound so the bubble is small, the VMEM saving large.
            kwargs["pipeline_mode"] = pl.Buffered(nbuf)
        return pl.BlockSpec((None, m, cf), lambda n: (n, 0, 0), **kwargs)

    in_specs = [slab_spec(buf_in),
                pl.BlockSpec((1, C), lambda n: (0, 0)),
                pl.BlockSpec((1, cf), lambda n: (0, 0))]
    inputs = [x_fold, gamma_c, beta_f]
    if fold > 1:
        in_specs += [pl.BlockSpec((cf, C), lambda n: (0, 0)),
                     pl.BlockSpec((C, cf), lambda n: (0, 0))]
        inputs += [gather, scatter]

    # TODO(synk): when N == 1 on a 2-TensorCore chip (v7x), split the slab into
    # two parallel halves (partial sum-of-squares + combine) so both cores work.
    return pl.pallas_call(
        functools.partial(_grn_slab_kernel, fold=fold, strip=strip),
        out_shape=jax.ShapeDtypeStruct((N, m, cf), x_fold.dtype),
        grid_spec=pltpu.PrefetchScalarGridSpec(
            num_scalar_prefetch=0,
            grid=(N,),
            in_specs=in_specs,
            out_specs=slab_spec(buf_out),
        ),
        compiler_params=pltpu.CompilerParams(
            dimension_semantics=("parallel",),
            vmem_limit_bytes=vmem_limit,
        ),
        cost_estimate=pl.CostEstimate(
            flops=6 * N * m * cf,
            transcendentals=2 * N * C,
            bytes_accessed=2 * N * m * cf * itemsize,
        ),
    )(*inputs)


def _grn_two_pass(x_fold, gamma_c, beta_f, gather, *, fold, cap, max_tile_rows):
    N, m, cf = x_fold.shape
    C = gamma_c.shape[-1]
    itemsize = x_fold.dtype.itemsize

    # Spatial tile: ~4 MiB of input per tile, multiple of 8 sublanes.
    tm = (4 << 20) // (cf * itemsize)
    tm = max(8, min(m, (tm // 8) * 8))
    if max_tile_rows is not None:
        tm = max(8, min(tm, (max_tile_rows // 8) * 8))
    m_pad = _round_up(m, tm)
    if m_pad != m:
        x_fold = jnp.pad(x_fold, ((0, 0), (0, m_pad - m), (0, 0)))
    n_mt = m_pad // tm

    tile_bytes = tm * cf * itemsize
    tile_f32 = tm * cf * 4
    vmem_limit = int(min(max(4 * tile_bytes + 2 * tile_f32 + (8 << 20), 32 << 20),
                         cap - (8 << 20)))

    # ---- pass 1: per-(N, C) sum of squares over spatial tiles --------------
    in_specs = [pl.BlockSpec((None, tm, cf), lambda n, mt: (n, mt, 0))]
    inputs = [x_fold]
    if fold > 1:
        in_specs.append(pl.BlockSpec((cf, C), lambda n, mt: (0, 0)))
        inputs.append(gather)

    ssq = pl.pallas_call(
        functools.partial(_grn_ssq_kernel, fold=fold),
        out_shape=jax.ShapeDtypeStruct((N, 1, C), jnp.float32),
        grid_spec=pltpu.PrefetchScalarGridSpec(
            num_scalar_prefetch=0,
            grid=(N, n_mt),
            in_specs=in_specs,
            out_specs=pl.BlockSpec((None, 1, C), lambda n, mt: (n, 0, 0)),
        ),
        compiler_params=pltpu.CompilerParams(
            dimension_semantics=("parallel", "arbitrary"),
            vmem_limit_bytes=vmem_limit,
        ),
        cost_estimate=pl.CostEstimate(
            flops=2 * N * m_pad * cf,
            transcendentals=0,
            bytes_accessed=N * m_pad * cf * itemsize + N * C * 4,
        ),
    )(*inputs)

    # ---- tiny host step: Gx, Nx, fused per-channel scale (N x C work) ------
    gx = jnp.sqrt(ssq.reshape(N, C))
    nx = gx / (jnp.mean(gx, axis=-1, keepdims=True) + 1e-6)
    scale = jnp.tile(gamma_c * nx + 1.0, (1, fold)).reshape(N, 1, cf)
    beta_3d = beta_f.reshape(1, 1, cf)

    # ---- pass 2: y = x * scale + beta ---------------------------------------
    return pl.pallas_call(
        _grn_apply_kernel,
        out_shape=jax.ShapeDtypeStruct((N, m_pad, cf), x_fold.dtype),
        grid_spec=pltpu.PrefetchScalarGridSpec(
            num_scalar_prefetch=0,
            grid=(N, n_mt),
            in_specs=[
                pl.BlockSpec((None, tm, cf), lambda n, mt: (n, mt, 0)),
                pl.BlockSpec((None, 1, cf), lambda n, mt: (n, 0, 0)),
                pl.BlockSpec((None, 1, cf), lambda n, mt: (0, 0, 0)),
            ],
            out_specs=pl.BlockSpec((None, tm, cf), lambda n, mt: (n, mt, 0)),
        ),
        compiler_params=pltpu.CompilerParams(
            dimension_semantics=("parallel", "parallel"),
            vmem_limit_bytes=vmem_limit,
        ),
        cost_estimate=pl.CostEstimate(
            flops=2 * N * m_pad * cf,
            transcendentals=0,
            bytes_accessed=2 * N * m_pad * cf * itemsize,
        ),
    )(x_fold, scale, beta_3d)


# ----------------------------------------------------------------------------
# Public wrapper
# ----------------------------------------------------------------------------
def grn_pallas(x, gamma, beta, *, force_two_pass=False, max_tile_rows=None):
    """GRN forward. x: (N, H, W, C); gamma, beta: (1, 1, 1, C)."""
    N, H, W, C = x.shape
    assert gamma.shape[-1] == C and beta.shape[-1] == C
    hw = H * W

    # Lane-dense layout: fold spatial positions into channels so the lane dim
    # is a multiple of 128; pad the spatial axis with zero rows so the fold
    # applies for any H*W (zeros do not change the sum of squares).
    fold = 128 // math.gcd(C, 128)
    cf = C * fold
    m = _round_up(pl.cdiv(hw, fold), 8)              # sublane-aligned rows
    padded_hw = m * fold

    x_flat = x.reshape(N, hw, C)
    if padded_hw != hw:
        x_flat = jnp.pad(x_flat, ((0, 0), (0, padded_hw - hw), (0, 0)))
    x_fold = x_flat.reshape(N, m, cf)

    gamma_c = gamma.reshape(1, C).astype(jnp.float32)
    beta_c = beta.reshape(1, C).astype(jnp.float32)
    beta_f = jnp.tile(beta_c, (1, fold))             # (1, Cf), pre-tiled bias

    if fold > 1:
        chan = jnp.arange(cf, dtype=jnp.int32) % C
        gather = (chan[:, None] == jnp.arange(C, dtype=jnp.int32)[None, :]
                  ).astype(jnp.float32)              # (Cf, C) fold-reduce
        scatter = gather.T                           # (C, Cf) fold-broadcast
    else:
        gather = scatter = None

    itemsize = x.dtype.itemsize
    cap = _vmem_capacity_bytes()
    # Generation-aware budget: ~48 MiB of v7x's 64 MiB, ~100 MiB of 128 MiB.
    budget = max(16 << 20, min(cap - (16 << 20), int(cap * 0.78)))

    slab_bytes = m * cf * itemsize
    strip = _pick_strip(m, cf)
    # Working set beyond the pipelined slabs: a few strip-sized f32 temps, the
    # (1, Cf) vectors, and the resident one-hot matrices.
    margin = (4 << 20) + 8 * strip * cf * 4 + 2 * cf * C * 4

    plan = None
    if not force_two_pass:
        for buf_in, buf_out in ((2, 2), (1, 2), (1, 1)):
            est = (buf_in + buf_out) * slab_bytes + margin
            if est <= budget:
                plan = (buf_in, buf_out, est)
                break

    if plan is not None:
        buf_in, buf_out, est = plan
        vmem_limit = int(min(max(est + (4 << 20), 32 << 20), cap - (8 << 20)))
        out_fold = _grn_single_slab(
            x_fold, gamma_c, beta_f, gather, scatter,
            fold=fold, strip=strip, buf_in=buf_in, buf_out=buf_out,
            vmem_limit=vmem_limit)
    else:
        out_fold = _grn_two_pass(
            x_fold, gamma_c, beta_f, gather,
            fold=fold, cap=cap, max_tile_rows=max_tile_rows)

    out = out_fold.reshape(N, -1, C)[:, :hw, :]
    return out.reshape(N, H, W, C)


# ----------------------------------------------------------------------------
# Pure-JAX reference + self-test
# ----------------------------------------------------------------------------
def grn_reference(x, gamma, beta):
    xf = x.astype(jnp.float32)
    gx = jnp.sqrt(jnp.sum(xf * xf, axis=(1, 2), keepdims=True))
    nx = gx / (jnp.mean(gx, axis=-1, keepdims=True) + 1e-6)
    return (gamma.astype(jnp.float32) * (xf * nx)
            + beta.astype(jnp.float32) + xf).astype(x.dtype)


def _check(name, out, ref, atol=1e-4, rtol=1e-4):
    assert out.shape == ref.shape, (name, out.shape, ref.shape)
    err = jnp.max(jnp.abs(out.astype(jnp.float32) - ref.astype(jnp.float32)))
    assert jnp.allclose(out, ref, atol=atol, rtol=rtol), (
        f"{name}: mismatch vs reference, max abs err {err}")


if __name__ == "__main__":
    key = jax.random.PRNGKey(0)
    kx, kg, kb, kx2 = jax.random.split(key, 4)

    # Case 1: small ConvNeXtV2-like shape (C=32 -> fold=4), single-slab path.
    N, H, W, C = 2, 16, 16, 32
    x = jax.random.normal(kx, (N, H, W, C), dtype=jnp.float32)
    # Module __init__ uses zeros; use non-zero params so the normalization path
    # is actually exercised.
    gamma = 0.1 * jax.random.normal(kg, (1, 1, 1, C), dtype=jnp.float32)
    beta = 0.1 * jax.random.normal(kb, (1, 1, 1, C), dtype=jnp.float32)
    ref = grn_reference(x, gamma, beta)

    out = jax.block_until_ready(grn_pallas(x, gamma, beta))
    _check("single_slab", out, ref)

    # Case 2: same inputs through the two-pass M-tiled fallback (forced, small
    # tiles so cross-tile sum-of-squares accumulation is exercised).
    out2 = jax.block_until_ready(
        grn_pallas(x, gamma, beta, force_two_pass=True, max_tile_rows=16))
    _check("two_pass", out2, ref)

    # Case 3: spatial size not divisible by the fold factor -> zero-row padding
    # keeps the lane-dense layout (H*W = 81, C = 48 -> fold = 8).
    H3, W3, C3 = 9, 9, 48
    x3 = jax.random.normal(kx2, (N, H3, W3, C3), dtype=jnp.float32)
    g3 = 0.1 * jnp.ones((1, 1, 1, C3), dtype=jnp.float32)
    b3 = 0.05 * jnp.ones((1, 1, 1, C3), dtype=jnp.float32)
    out3 = jax.block_until_ready(grn_pallas(x3, g3, b3))
    _check("padded_fold", out3, grn_reference(x3, g3, b3))

    print("KERNEL_OK")
</pallas_src>

<mosaic_0001>
module attributes {stable_mosaic.version = 11 : i64} {
  func.func @_grn_slab_kernel(%arg0: i32, %arg1: memref<1x64x128xf32, #tpu.memory_space<vmem>>, %arg2: memref<1x32xf32, #tpu.memory_space<vmem>>, %arg3: memref<1x128xf32, #tpu.memory_space<vmem>>, %arg4: memref<128x32xf32, #tpu.memory_space<vmem>>, %arg5: memref<32x128xf32, #tpu.memory_space<vmem>>, %arg6: memref<1x64x128xf32, #tpu.memory_space<vmem>>) attributes {dimension_semantics = [#tpu.dimension_semantics<parallel>], iteration_bounds = array<i64: 2>, scalar_prefetch = 0 : i64, scratch_operands = 0 : i64, tpu.core_type = #tpu.core_type<tc>, window_params = [{transform_indices = @transform_0, window_bounds = array<i64: 1, 64, 128>}, {pipeline_mode = #tpu.pipeline_mode<synchronous>, transform_indices = @transform_1, window_bounds = array<i64: 1, 32>}, {pipeline_mode = #tpu.pipeline_mode<synchronous>, transform_indices = @transform_2, window_bounds = array<i64: 1, 128>}, {pipeline_mode = #tpu.pipeline_mode<synchronous>, transform_indices = @transform_3, window_bounds = array<i64: 128, 32>}, {pipeline_mode = #tpu.pipeline_mode<synchronous>, transform_indices = @transform_4, window_bounds = array<i64: 32, 128>}, {transform_indices = @transform_5, window_bounds = array<i64: 1, 64, 128>}]} {
    %cst = arith.constant 0.000000e+00 : f32
    %0 = vector.broadcast %cst : f32 to vector<1x128xf32>
    %c0_i32 = arith.constant 0 : i32
    %c64_i32 = arith.constant 64 : i32
    %1 = arith.muli %c0_i32, %c64_i32 : i32
    %2 = tpu.assume_multiple %1, 64 : i32
    %c0 = arith.constant 0 : index
    %3 = arith.index_cast %2 : i32 to index
    %c0_0 = arith.constant 0 : index
    %4 = vector.load %arg1[%c0, %3, %c0_0] : memref<1x64x128xf32, #tpu.memory_space<vmem>>, vector<1x64x128xf32>
    %5 = vector.shape_cast %4 : vector<1x64x128xf32> to vector<64x128xf32>
    %6 = arith.mulf %5, %5 : vector<64x128xf32>
    %cst_1 = arith.constant dense<0.000000e+00> : vector<128xf32>
    %7 = vector.multi_reduction <add>, %6, %cst_1 [0] : vector<64x128xf32> to vector<128xf32>
    %8 = vector.shape_cast %7 : vector<128xf32> to vector<1x128xf32>
    %9 = arith.addf %0, %8 : vector<1x128xf32>
    %c1_i32 = arith.constant 1 : i32
    %c0_2 = arith.constant 0 : index
    %c0_3 = arith.constant 0 : index
    %10 = vector.load %arg4[%c0_2, %c0_3] : memref<128x32xf32, #tpu.memory_space<vmem>>, vector<128x32xf32>
    %cst_4 = arith.constant dense<0.000000e+00> : vector<1x32xf32>
    %11 = tpu.matmul %9, %10, %cst_4 {dimension_numbers = #tpu.dot_dimension_numbers<[1], [0], [0], [1], [0, 0, 1, 1], [], []>} : vector<1x128xf32>, vector<128x32xf32>, vector<1x32xf32> -> vector<1x32xf32>
    %12 = math.sqrt %11 : vector<1x32xf32>
    %cst_5 = arith.constant dense<0.000000e+00> : vector<1xf32>
    %13 = vector.multi_reduction <add>, %12, %cst_5 [1] : vector<1x32xf32> to vector<1xf32>
    %14 = vector.shape_cast %13 : vector<1xf32> to vector<1x1xf32>
    %cst_6 = arith.constant 3.200000e+01 : f32
    %15 = vector.broadcast %cst_6 : f32 to vector<1x1xf32>
    %16 = arith.divf %14, %15 : vector<1x1xf32>
    %cst_7 = arith.constant 9.99999997E-7 : f32
    %17 = vector.broadcast %cst_7 : f32 to vector<1x1xf32>
    %18 = arith.addf %16, %17 : vector<1x1xf32>
    %19 = tpu.reciprocal %18 {approx = true} : vector<1x1xf32> -> vector<1x1xf32>
    %20 = arith.mulf %18, %19 : vector<1x1xf32>
    %cst_8 = arith.constant 2.000000e+00 : f32
    %21 = vector.broadcast %cst_8 : f32 to vector<1x1xf32>
    %22 = arith.subf %21, %20 : vector<1x1xf32>
    %23 = arith.mulf %19, %22 : vector<1x1xf32>
    %c0_9 = arith.constant 0 : index
    %c0_10 = arith.constant 0 : index
    %24 = vector.load %arg2[%c0_9, %c0_10] : memref<1x32xf32, #tpu.memory_space<vmem>>, vector<1x32xf32>
    %25 = vector.broadcast %23 : vector<1x1xf32> to vector<1x32xf32>
    %26 = arith.mulf %12, %25 : vector<1x32xf32>
    %27 = arith.mulf %24, %26 : vector<1x32xf32>
    %cst_11 = arith.constant 1.000000e+00 : f32
    %28 = vector.broadcast %cst_11 : f32 to vector<1x32xf32>
    %29 = arith.addf %27, %28 : vector<1x32xf32>
    %c0_12 = arith.constant 0 : index
    %c0_13 = arith.constant 0 : index
    %30 = vector.load %arg5[%c0_12, %c0_13] : memref<32x128xf32, #tpu.memory_space<vmem>>, vector<32x128xf32>
    %cst_14 = arith.constant dense<0.000000e+00> : vector<1x128xf32>
    %31 = tpu.matmul %29, %30, %cst_14 {dimension_numbers = #tpu.dot_dimension_numbers<[1], [0], [0], [1], [0, 0, 1, 1], [], []>} : vector<1x32xf32>, vector<32x128xf32>, vector<1x128xf32> -> vector<1x128xf32>
    %32 = vector.shape_cast %31 : vector<1x128xf32> to vector<1x128xf32>
    %33 = vector.broadcast %32 : vector<1x128xf32> to vector<64x128xf32>
    %c0_15 = arith.constant 0 : index
    %c0_16 = arith.constant 0 : index
    %34 = vector.load %arg3[%c0_15, %c0_16] : memref<1x128xf32, #tpu.memory_space<vmem>>, vector<1x128xf32>
    %35 = vector.shape_cast %34 : vector<1x128xf32> to vector<1x128xf32>
    %36 = vector.broadcast %35 : vector<1x128xf32> to vector<64x128xf32>
    %c0_i32_17 = arith.constant 0 : i32
    %c64_i32_18 = arith.constant 64 : i32
    %37 = arith.muli %c0_i32_17, %c64_i32_18 : i32
    %38 = tpu.assume_multiple %37, 64 : i32
    %c0_19 = arith.constant 0 : index
    %39 = arith.index_cast %38 : i32 to index
    %c0_20 = arith.constant 0 : index
    %40 = vector.load %arg1[%c0_19, %39, %c0_20] : memref<1x64x128xf32, #tpu.memory_space<vmem>>, vector<1x64x128xf32>
    %41 = vector.shape_cast %40 : vector<1x64x128xf32> to vector<64x128xf32>
    %42 = arith.mulf %41, %33 : vector<64x128xf32>
    %43 = arith.addf %42, %36 : vector<64x128xf32>
    %c0_21 = arith.constant 0 : index
    %44 = arith.index_cast %38 : i32 to index
    %c0_22 = arith.constant 0 : index
    %45 = vector.load %arg6[%c0_21, %44, %c0_22] : memref<1x64x128xf32, #tpu.memory_space<vmem>>, vector<1x64x128xf32>
    %46 = vector.shape_cast %45 : vector<1x64x128xf32> to vector<64x128xf32>
    %47 = vector.shape_cast %43 : vector<64x128xf32> to vector<1x64x128xf32>
    tpu.vector_store %arg6[%c0_21, %44, %c0_22], %47 {strides = array<i32>} : memref<1x64x128xf32, #tpu.memory_space<vmem>>, vector<1x64x128xf32>,
    %c1_i32_23 = arith.constant 1 : i32
    return
  }
  func.func @transform_0(%arg0: i32) -> (i32, i32, i32) {
    %c0_i32 = arith.constant 0 : i32
    %c0_i32_0 = arith.constant 0 : i32
    %c0_i32_1 = arith.constant 0 : i32
    return %arg0, %c0_i32, %c0_i32_0 : i32, i32, i32
  }
  func.func @transform_1(%arg0: i32) -> (i32, i32) {
    %c0_i32 = arith.constant 0 : i32
    %c0_i32_0 = arith.constant 0 : i32
    %c0_i32_1 = arith.constant 0 : i32
    return %c0_i32, %c0_i32_0 : i32, i32
  }
  func.func @transform_2(%arg0: i32) -> (i32, i32) {
    %c0_i32 = arith.constant 0 : i32
    %c0_i32_0 = arith.constant 0 : i32
    %c0_i32_1 = arith.constant 0 : i32
    return %c0_i32, %c0_i32_0 : i32, i32
  }
  func.func @transform_3(%arg0: i32) -> (i32, i32) {
    %c0_i32 = arith.constant 0 : i32
    %c0_i32_0 = arith.constant 0 : i32
    %c0_i32_1 = arith.constant 0 : i32
    return %c0_i32, %c0_i32_0 : i32, i32
  }
  func.func @transform_4(%arg0: i32) -> (i32, i32) {
    %c0_i32 = arith.constant 0 : i32
    %c0_i32_0 = arith.constant 0 : i32
    %c0_i32_1 = arith.constant 0 : i32
    return %c0_i32, %c0_i32_0 : i32, i32
  }
  func.func @transform_5(%arg0: i32) -> (i32, i32, i32) {
    %c0_i32 = arith.constant 0 : i32
    %c0_i32_0 = arith.constant 0 : i32
    %c0_i32_1 = arith.constant 0 : i32
    return %arg0, %c0_i32, %c0_i32_0 : i32, i32, i32
  }
}

</mosaic_0001>

<llo_original>
// kernel: tpu_custom_call.1
$region0: #{tpu_custom_call.1}
  #allocation0 [shape = 'u32[]', space=smem, size = 0x4, offset = 0x4, fixed_abs, tag = 'smem constant byte address 0x4 - core index']
  #allocation1 [shape = 'u32[144,128]{1,0:T(1,128)}', space=vmem, size = 0x12000, scoped, tag = 'internal scratch']
  %s0 = inlined_call_operand.vmem [shape: f32[2,64,128], index: 0, kind: input, shape index: {}]
  %s1 = inlined_call_operand.vmem [shape: f32[1,32], index: 1, kind: input, shape index: {}]
  %s2 = inlined_call_operand.vmem [shape: f32[1,128], index: 2, kind: input, shape index: {}]
  %s3 = inlined_call_operand.vmem [shape: f32[128,32], index: 3, kind: input, shape index: {}]
  %s4 = inlined_call_operand.vmem [shape: f32[32,128], index: 4, kind: input, shape index: {}]
  %s5 = inlined_call_operand.hbm [shape: f32[2,64,128], index: 5, kind: output, shape index: {}]
  %s6 = sld [smem:[#allocation0]]
  $region53: #{tpu_custom_call.1} parent=0
    _
  %s8 = ssub.s32 1, %s6
  %s9 = scalar_select 0, %s8, %s6
  $region1: #{tpu_custom_call.1} parent=0
    #allocation2 [shape = 'u8[65536]{0}', space=vmem, size = 0x10000, scoped, tag = 'output window, operand 0']
    #allocation3 [shape = 's32[2]{0}', space=sflag, size = 0x8, scoped, tag = 'scoped memory for tpu_custom_call.1']
    %10 = vsyncpa [#allocation3], 0
    %s11 = scalar_lea.sflag [#allocation3], 1
    %12 = vsyncpa %s11, 0
    loop: start=0, step=1, limit=4
    $region2: #{tpu_custom_call.1} parent=1 // loop_pre_header
      _
    $region3: #{tpu_custom_call.1} parent=1 // loop_header
      %s14 = sphi 0, %s18
      %p15 = scmp.ge.s32.totalorder %s14, 4
      %s24 = sphi 0, %s26
      %s27 = sphi 0, %s24
      %s28 = sphi 0, %s27
      %s44 = sphi 0, %s28
      %s48 = sphi 0, %s48
      %s50 = sphi 0, %s48
      %s51 = sphi 0, %s50
      %s65 = sphi 0, %s51
      %s69 = sphi 0, %s69
      %s71 = sphi 0, %s69
      %s72 = sphi 0, %s71
      %s86 = sphi 0, %s72
      %s90 = sphi 0, %s90
      %s92 = sphi 0, %s90
      %s93 = sphi 0, %s92
      %s107 = sphi 0, %s93
      %s111 = sphi 0, %s111
      %s113 = sphi 0, %s111
      %s114 = sphi 0, %s113
      %s128 = sphi 0, %s114
      %s134 = sphi 0, %s136
      %s137 = sphi 0, %s134
      %s138 = sphi 0, %s137
      %s154 = sphi 0, %s138
    $region4: #{tpu_custom_call.1} parent=1 // loop_header_branch
      %17 = sbr.rel (%p15) target = $region8
    $region5: #{tpu_custom_call.1} parent=1 // loop_body
      %s19 = ssub.s32 %s14, 1
      %s20 = ssub.s32 %s14, 2
      %s21 = sadd.s32 %s14, 1
      %s22 = ssub.s32 %s14, %s21
      %p23 = scmp.eq.s32.totalorder %s22, 0
      %s25 = sadd.s32 %s24, 1
      %s26 = scalar_select %p23, %s24, %s25
      %p29 = pneg %p23
      %p30 = scmp.eq.s32.totalorder %s14, 1
      %p31 = por %p29, %p30
      %p32 = scmp.ne.s32.totalorder %s24, %s27
      %p33 = scmp.eq.s32.totalorder %s14, 0
      %p34 = por %p32, %p33
      %p35 = scmp.ne.s32.totalorder %s24, %s27
      %p36 = scmp.eq.s32.totalorder %s19, 1
      %p37 = por %p35, %p36
      %p38 = scmp.ne.s32.totalorder %s27, %s28
      %p39 = scmp.eq.s32.totalorder %s19, 0
      %p40 = por %p38, %p39
      %p41 = scmp.ne.s32.totalorder %s27, %s28
      %p42 = scmp.eq.s32.totalorder %s20, 1
      %p43 = por %p41, %p42
      %p45 = scmp.ne.s32.totalorder %s28, %s44
      %p46 = scmp.eq.s32.totalorder %s20, 0
      %p47 = por %p45, %p46
      %s49 = sadd.s32 %s48, 1
      %p52 = scmp.eq.s32.totalorder %s14, 1
      %p53 = scmp.ne.s32.totalorder %s48, %s50
      %p54 = scmp.eq.s32.totalorder %s14, 0
      %p55 = por %p53, %p54
      %p56 = scmp.ne.s32.totalorder %s48, %s50
      %p57 = scmp.eq.s32.totalorder %s19, 1
      %p58 = por %p56, %p57
      %p59 = scmp.ne.s32.totalorder %s50, %s51
      %p60 = scmp.eq.s32.totalorder %s19, 0
      %p61 = por %p59, %p60
      %p62 = scmp.ne.s32.totalorder %s50, %s51
      %p63 = scmp.eq.s32.totalorder %s20, 1
      %p64 = por %p62, %p63
      %p66 = scmp.ne.s32.totalorder %s51, %s65
      %p67 = scmp.eq.s32.totalorder %s20, 0
      %p68 = por %p66, %p67
      %s70 = sadd.s32 %s69, 1
      %p73 = scmp.eq.s32.totalorder %s14, 1
      %p74 = scmp.ne.s32.totalorder %s69, %s71
      %p75 = scmp.eq.s32.totalorder %s14, 0
      %p76 = por %p74, %p75
      %p77 = scmp.ne.s32.totalorder %s69, %s71
      %p78 = scmp.eq.s32.totalorder %s19, 1
      %p79 = por %p77, %p78
      %p80 = scmp.ne.s32.totalorder %s71, %s72
      %p81 = scmp.eq.s32.totalorder %s19, 0
      %p82 = por %p80, %p81
      %p83 = scmp.ne.s32.totalorder %s71, %s72
      %p84 = scmp.eq.s32.totalorder %s20, 1
      %p85 = por %p83, %p84
      %p87 = scmp.ne.s32.totalorder %s72, %s86
      %p88 = scmp.eq.s32.totalorder %s20, 0
      %p89 = por %p87, %p88
      %s91 = sadd.s32 %s90, 1
      %p94 = scmp.eq.s32.totalorder %s14, 1
      %p95 = scmp.ne.s32.totalorder %s90, %s92
      %p96 = scmp.eq.s32.totalorder %s14, 0
      %p97 = por %p95, %p96
      %p98 = scmp.ne.s32.totalorder %s90, %s92
      %p99 = scmp.eq.s32.totalorder %s19, 1
      %p100 = por %p98, %p99
      %p101 = scmp.ne.s32.totalorder %s92, %s93
      %p102 = scmp.eq.s32.totalorder %s19, 0
      %p103 = por %p101, %p102
      %p104 = scmp.ne.s32.totalorder %s92, %s93
      %p105 = scmp.eq.s32.totalorder %s20, 1
      %p106 = por %p104, %p105
      %p108 = scmp.ne.s32.totalorder %s93, %s107
      %p109 = scmp.eq.s32.totalorder %s20, 0
      %p110 = por %p108, %p109
      %s112 = sadd.s32 %s111, 1
      %p115 = scmp.eq.s32.totalorder %s14, 1
      %p116 = scmp.ne.s32.totalorder %s111, %s113
      %p117 = scmp.eq.s32.totalorder %s14, 0
      %p118 = por %p116, %p117
      %p119 = scmp.ne.s32.totalorder %s111, %s113
      %p120 = scmp.eq.s32.totalorder %s19, 1
      %p121 = por %p119, %p120
      %p122 = scmp.ne.s32.totalorder %s113, %s114
      %p123 = scmp.eq.s32.totalorder %s19, 0
      %p124 = por %p122, %p123
      %p125 = scmp.ne.s32.totalorder %s113, %s114
      %p126 = scmp.eq.s32.totalorder %s20, 1
      %p127 = por %p125, %p126
      %p129 = scmp.ne.s32.totalorder %s114, %s128
      %p130 = scmp.eq.s32.totalorder %s20, 0
      %p131 = por %p129, %p130
      %s132 = ssub.s32 %s14, %s21
      %p133 = scmp.eq.s32.totalorder %s132, 0
      %s135 = sadd.s32 %s134, 1
      %s136 = scalar_select %p133, %s134, %s135
      %p139 = pneg %p133
      %p140 = scmp.eq.s32.totalorder %s14, 1
      %p141 = por %p139, %p140
      %p142 = scmp.ne.s32.totalorder %s134, %s137
      %p143 = scmp.eq.s32.totalorder %s14, 0
      %p144 = por %p142, %p143
      %p145 = scmp.ne.s32.totalorder %s134, %s137
      %p146 = scmp.eq.s32.totalorder %s19, 1
      %p147 = por %p145, %p146
      %p148 = scmp.ne.s32.totalorder %s137, %s138
      %p149 = scmp.eq.s32.totalorder %s19, 0
      %p150 = por %p148, %p149
      %p151 = scmp.ne.s32.totalorder %s137, %s138
      %p152 = scmp.eq.s32.totalorder %s20, 1
      %p153 = por %p151, %p152
      %p155 = scmp.ne.s32.totalorder %s138, %s154
      %p156 = scmp.eq.s32.totalorder %s20, 0
      %p157 = por %p155, %p156
      %p158 = scmp.le.s32.totalorder 1, %s14
      %p159 = scmp.lt.s32.totalorder %s14, 3
      %p160 = pnand %p158, %p159
      %p161 = pneg %p160
      // Predicated region
      $region9: #{tpu_custom_call.1} parent=5 // pred_check
        _
      $region10: #{tpu_custom_call.1} parent=5 // pred_check_branch
        %163 = sbr.rel (%p160) target = $region12
      $region11: #{tpu_custom_call.1} parent=5 // pred_region
        %s164 = ssub.s32 %s14, 1
        // Predicated region
        $region13: #{tpu_custom_call.1} parent=11 // pred_check
          %p165 = pneg %p61
        $region14: #{tpu_custom_call.1} parent=11 // pred_check_branch
          %167 = sbr.rel (%p165) target = $region16
        $region15: #{tpu_custom_call.1} parent=11 // pred_region
          _
        $region16: #{tpu_custom_call.1} parent=11 // pred_fallthru
          _
        // Predicated region
        $region17: #{tpu_custom_call.1} parent=11 // pred_check
          %p168 = pneg %p82
        $region18: #{tpu_custom_call.1} parent=11 // pred_check_branch
          %170 = sbr.rel (%p168) target = $region20
        $region19: #{tpu_custom_call.1} parent=11 // pred_region
          _
        $region20: #{tpu_custom_call.1} parent=11 // pred_fallthru
          _
        // Predicated region
        $region21: #{tpu_custom_call.1} parent=11 // pred_check
          %p171 = pneg %p103
        $region22: #{tpu_custom_call.1} parent=11 // pred_check_branch
          %173 = sbr.rel (%p171) target = $region24
        $region23: #{tpu_custom_call.1} parent=11 // pred_region
          _
        $region24: #{tpu_custom_call.1} parent=11 // pred_fallthru
          _
        // Predicated region
        $region25: #{tpu_custom_call.1} parent=11 // pred_check
          %p174 = pneg %p124
        $region26: #{tpu_custom_call.1} parent=11 // pred_check_branch
          %176 = sbr.rel (%p174) target = $region28
        $region27: #{tpu_custom_call.1} parent=11 // pred_region
          _
        $region28: #{tpu_custom_call.1} parent=11 // pred_fallthru
          _
      $region12: #{tpu_custom_call.1} parent=5 // pred_fallthru
        _
      %p177 = scmp.lt.s32.totalorder %s14, 2
      // Predicated region
      $region29: #{tpu_custom_call.1} parent=5 // pred_check
        %p178 = pneg %p177
      $region30: #{tpu_custom_call.1} parent=5 // pred_check_branch
        %180 = sbr.rel (%p178) target = $region32
      $region31: #{tpu_custom_call.1} parent=5 // pred_region
        // Predicated region
        $region33: #{tpu_custom_call.1} parent=31 // pred_check
          %p181 = pneg %p34
        $region34: #{tpu_custom_call.1} parent=31 // pred_check_branch
          %183 = sbr.rel (%p181) target = $region36
        $region35: #{tpu_custom_call.1} parent=31 // pred_region
          %p184 = scmp.lt.s32.totalorder %s14, 1
          %s185 = scalar_select %p184, %s14, 1
          %s186 = smul.addr %s185, 8
          %s187 = smul.addr %s186, 8
          %s188 = scalar_lea.vmem %s0, %s187
        $region36: #{tpu_custom_call.1} parent=31 // pred_fallthru
          _
      $region32: #{tpu_custom_call.1} parent=5 // pred_fallthru
        _
      %p189 = scmp.le.s32.totalorder 1, %s14
      %p190 = scmp.lt.s32.totalorder %s14, 3
      %p191 = pnand %p189, %p190
      %p192 = pneg %p191
      // Predicated region
      $region37: #{tpu_custom_call.1} parent=5 // pred_check
        _
      $region38: #{tpu_custom_call.1} parent=5 // pred_check_branch
        %194 = sbr.rel (%p191) target = $region40
      $region39: #{tpu_custom_call.1} parent=5 // pred_region
        %s195 = ssub.s32 %s14, 1
        %p196 = scmp.lt.s32.totalorder %s19, 1
        %s197 = scalar_select %p196, %s19, 1
        %s198 = smul.addr %s197, 8
        %s199 = smul.addr %s198, 8
        %s200 = scalar_lea.vmem %s0, %s199
        %p201 = pneg %p40
        %p202 = pneg %p37
        %p203 = pneg %p61
        %p204 = pneg %p58
        %p205 = pneg %p82
        %p206 = pneg %p79
        %p207 = pneg %p103
        %p208 = pneg %p100
        %p209 = pneg %p124
        %p210 = pneg %p121
        %p211 = pneg %p150
        %p212 = pneg %p147
        %s213 = sand.u32 %s137, 1
        %s214 = scalar_lea.sflag [#allocation3], %s213
        %s215 = sand.u32 %s137, 1
        %s216 = smul.addr %s215, 64
        %s217 = scalar_lea.vmem [#allocation2], %s216
        %p218 = scmp.lt.s32.totalorder %s19, 1
        %s219 = scalar_select %p218, %s19, 1
        %s220 = smul.addr %s219, 8
        %s221 = smul.addr %s220, 8
        %s222 = scalar_lea.vmem %s0, %s221
        %v223 = vld [vmem:[%s222] sm:$0xff]
        %v224 = vld [vmem:[%s222 + $0x8] sm:$0xff]
        %v225 = vld [vmem:[%s222 + $0x10] sm:$0xff]
        %v226 = vld [vmem:[%s222 + $0x18] sm:$0xff]
        %v227 = vld [vmem:[%s222 + $0x20] sm:$0xff]
        %v228 = vld [vmem:[%s222 + $0x28] sm:$0xff]
        %v229 = vld [vmem:[%s222 + $0x30] sm:$0xff]
        %v230 = vld [vmem:[%s222 + $0x38] sm:$0xff]
        %v231 = vmul.f32 %v223, %v223
        %v232 = vmul.f32 %v224, %v224
        %v233 = vmul.f32 %v225, %v225
        %v234 = vmul.f32 %v226, %v226
        %v235 = vmul.f32 %v227, %v227
        %v236 = vmul.f32 %v228, %v228
        %v237 = vmul.f32 %v229, %v229
        %v238 = vmul.f32 %v230, %v230
        %v239 = vadd.f32 %v231, %v232
        %v240 = vadd.f32 %v239, %v233
        %v241 = vadd.f32 %v240, %v234
        %v242 = vadd.f32 %v241, %v235
        %v243 = vadd.f32 %v242, %v236
        %v244 = vadd.f32 %v243, %v237
        %v245 = vadd.f32 %v244, %v238
        %v246 = vrot.slane %v245, 4
        %v247 = vadd.f32 %v245, %v246
        %v248 = vrot.slane %v247, 2
        %v249 = vadd.f32 %v247, %v248
        %v250 = vrot.slane %v249, 1
        %v251 = vadd.f32 %v249, %v250
        %v252 = vadd.f32 %v251, 0.0
        %v253 = vld [vmem:[%s3] sm:$0xff]
        %v254 = vld [vmem:[%s3 + $0x8] sm:$0xff]
        %v255 = vld [vmem:[%s3 + $0x10] sm:$0xff]
        %v256 = vld [vmem:[%s3 + $0x18] sm:$0xff]
        %v257 = vld [vmem:[%s3 + $0x20] sm:$0xff]
        %v258 = vld [vmem:[%s3 + $0x28] sm:$0xff]
        %v259 = vld [vmem:[%s3 + $0x30] sm:$0xff]
        %v260 = vld [vmem:[%s3 + $0x38] sm:$0xff]
        %v261 = vld [vmem:[%s3 + $0x40] sm:$0xff]
        %v262 = vld [vmem:[%s3 + $0x48] sm:$0xff]
        %v263 = vld [vmem:[%s3 + $0x50] sm:$0xff]
        %v264 = vld [vmem:[%s3 + $0x58] sm:$0xff]
        %v265 = vld [vmem:[%s3 + $0x60] sm:$0xff]
        %v266 = vld [vmem:[%s3 + $0x68] sm:$0xff]
        %v267 = vld [vmem:[%s3 + $0x70] sm:$0xff]
        %v268 = vld [vmem:[%s3 + $0x78] sm:$0xff]
        %269 = vmatprep.subr.mxu0 0.0
        %270 = vmatpush1.msra.mxu0 %v268
        %271 = vmatprep.subr.mxu0 0.0
        %272 = vmatpush1.msra.mxu0 %v267
        %273 = vmatprep.subr.mxu0 0.0
        %274 = vmatpush1.msra.mxu0 %v266
        %275 = vmatprep.subr.mxu0 0.0
        %276 = vmatpush1.msra.mxu0 %v265
        %277 = vmatprep.subr.mxu0 0.0
        %278 = vmatpush1.msra.mxu0 %v264
        %279 = vmatprep.subr.mxu0 0.0
        %280 = vmatpush1.msra.mxu0 %v263
        %281 = vmatprep.subr.mxu0 0.0
        %282 = vmatpush1.msra.mxu0 %v262
        %283 = vmatprep.subr.mxu0 0.0
        %284 = vmatpush1.msra.mxu0 %v261
        %285 = vmatprep.subr.mxu0 0.0
        %286 = vmatpush1.msra.mxu0 %v260
        %287 = vmatprep.subr.mxu0 0.0
        %288 = vmatpush1.msra.mxu0 %v259
        %289 = vmatprep.subr.mxu0 0.0
        %290 = vmatpush1.msra.mxu0 %v258
        %291 = vmatprep.subr.mxu0 0.0
        %292 = vmatpush1.msra.mxu0 %v257
        %293 = vmatprep.subr.mxu0 0.0
        %294 = vmatpush1.msra.mxu0 %v256
        %295 = vmatprep.subr.mxu0 0.0
        %296 = vmatpush1.msra.mxu0 %v255
        %297 = vmatprep.subr.mxu0 0.0
        %298 = vmatpush1.msra.mxu0 %v254
        %299 = vmatprep.subr.mxu0 0.0
        %300 = vmatpush1.msra.mxu0 %v253
        %301 = vmatprep.subr.mxu0 0.0
        %302 = vmatpush2.msra.mxu0 0.0
        %303 = vmatprep.subr.mxu0 0.0
        %304 = vmatpush2.msra.mxu0 0.0
        %305 = vmatprep.subr.mxu0 0.0
        %306 = vmatpush2.msra.mxu0 0.0
        %307 = vmatprep.subr.mxu0 0.0
        %308 = vmatpush2.msra.mxu0 0.0
        %309 = vmatprep.subr.mxu0 0.0
        %310 = vmatpush2.msra.mxu0 0.0
        %311 = vmatprep.subr.mxu0 0.0
        %312 = vmatpush2.msra.mxu0 0.0
        %313 = vmatprep.subr.mxu0 0.0
        %314 = vmatpush2.msra.mxu0 0.0
        %315 = vmatprep.subr.mxu0 0.0
        %316 = vmatpush2.msra.mxu0 0.0
        %317 = vmatprep.subr.mxu0 0.0
        %318 = vmatpush2.msra.mxu0 0.0
        %319 = vmatprep.subr.mxu0 0.0
        %320 = vmatpush2.msra.mxu0 0.0
        %321 = vmatprep.subr.mxu0 0.0
        %322 = vmatpush2.msra.mxu0 0.0
        %323 = vmatprep.subr.mxu0 0.0
        %324 = vmatpush2.msra.mxu0 0.0
        %325 = vmatprep.subr.mxu0 0.0
        %326 = vmatpush2.msra.mxu0 0.0
        %327 = vmatprep.subr.mxu0 0.0
        %328 = vmatpush2.msra.mxu0 0.0
        %329 = vmatprep.subr.mxu0 0.0
        %330 = vmatpush2.msra.mxu0 0.0
        %331 = vmatprep.subr.mxu0 0.0
        %332 = vmatpush2.msra.mxu0 0.0
        %333 = vmatprep.mubr.f32.mxu0 0.0
        %334 = vmatmul.mubr.f32.gmra.mxu0 %v252
        %v335 = vpop.f32.mrf.mxu0
        %v336 = vadd.f32 0.0, %v335
        %v337 = vpop.f32.mrf.mxu0
        %338 = vdwg.mxu0
        %v339 = vrsqrt.pop %v336
        %v340 = vmul.f32 %v336, %v339
        %vm341 = vcmp.eq.f32.partialorder %v336, inf
        %v342 = vsel %vm341, %v336, %v340
        %vm343 = vcmp.eq.f32.partialorder %v336, 0.0
        %v344 = vand.u32 %v336, 2147483648
        %v345 = vsel %vm343, %v344, %v342
        %vm346 = vcmask 253952
        %v347 = vsel %vm346, %v345, 0.0
        %348 = vadd.xlane.f32.xlu0 %v347
        %v349 = vpop.xlane.xlu0 %348
        %v350 = vrcp.pop 32.0
        %v351 = vmul.f32 %v349, %v350
        %v352 = vadd.f32 %v351, 1e-06
        %v353 = vrcp.pop %v352
        %v354 = vmul.f32 %v352, %v353
        %v355 = vsub.f32 2.0, %v354
        %v356 = vmul.f32 %v353, %v355
        %v357 = vld [vmem:[%s1] sm:$0x1]
        %v358 = vmul.f32 %v345, %v356
        %v359 = vmul.f32 %v357, %v358
        %v360 = vadd.f32 %v359, 1.0
        %v361 = vld [vmem:[%s4] sm:$0xff]
        %v362 = vld [vmem:[%s4 + $0x8] sm:$0xff]
        %v363 = vld [vmem:[%s4 + $0x10] sm:$0xff]
        %v364 = vld [vmem:[%s4 + $0x18] sm:$0xff]
        %vm365 = vcmask 261120
        %v367 = vsel %vm365, %v360, 0
        %369 = vmatprep.subr.mxu0 0.0
        %370 = vmatpush1.msra.mxu0 0.0
        %371 = vmatprep.subr.mxu0 0.0
        %372 = vmatpush1.msra.mxu0 0.0
        %373 = vmatprep.subr.mxu0 0.0
        %374 = vmatpush1.msra.mxu0 0.0
        %375 = vmatprep.subr.mxu0 0.0
        %376 = vmatpush1.msra.mxu0 0.0
        %377 = vmatprep.subr.mxu0 0.0
        %378 = vmatpush1.msra.mxu0 0.0
        %379 = vmatprep.subr.mxu0 0.0
        %380 = vmatpush1.msra.mxu0 0.0
        %381 = vmatprep.subr.mxu0 0.0
        %382 = vmatpush1.msra.mxu0 0.0
        %383 = vmatprep.subr.mxu0 0.0
        %384 = vmatpush1.msra.mxu0 0.0
        %385 = vmatprep.subr.mxu0 0.0
        %386 = vmatpush1.msra.mxu0 0.0
        %387 = vmatprep.subr.mxu0 0.0
        %388 = vmatpush1.msra.mxu0 0.0
        %389 = vmatprep.subr.mxu0 0.0
        %390 = vmatpush1.msra.mxu0 0.0
        %391 = vmatprep.subr.mxu0 0.0
        %392 = vmatpush1.msra.mxu0 0.0
        %393 = vmatprep.subr.mxu0 0.0
        %394 = vmatpush1.msra.mxu0 %v364
        %395 = vmatprep.subr.mxu0 0.0
        %396 = vmatpush1.msra.mxu0 %v363
        %397 = vmatprep.subr.mxu0 0.0
        %398 = vmatpush1.msra.mxu0 %v362
        %399 = vmatprep.subr.mxu0 0.0
        %400 = vmatpush1.msra.mxu0 %v361
        %401 = vmatprep.subr.mxu0 0.0
        %402 = vmatpush2.msra.mxu0 0.0
        %403 = vmatprep.subr.mxu0 0.0
        %404 = vmatpush2.msra.mxu0 0.0
        %405 = vmatprep.subr.mxu0 0.0
        %406 = vmatpush2.msra.mxu0 0.0
        %407 = vmatprep.subr.mxu0 0.0
        %408 = vmatpush2.msra.mxu0 0.0
        %409 = vmatprep.subr.mxu0 0.0
        %410 = vmatpush2.msra.mxu0 0.0
        %411 = vmatprep.subr.mxu0 0.0
        %412 = vmatpush2.msra.mxu0 0.0
        %413 = vmatprep.subr.mxu0 0.0
        %414 = vmatpush2.msra.mxu0 0.0
        %415 = vmatprep.subr.mxu0 0.0
        %416 = vmatpush2.msra.mxu0 0.0
        %417 = vmatprep.subr.mxu0 0.0
        %418 = vmatpush2.msra.mxu0 0.0
        %419 = vmatprep.subr.mxu0 0.0
        %420 = vmatpush2.msra.mxu0 0.0
        %421 = vmatprep.subr.mxu0 0.0
        %422 = vmatpush2.msra.mxu0 0.0
        %423 = vmatprep.subr.mxu0 0.0
        %424 = vmatpush2.msra.mxu0 0.0
        %425 = vmatprep.subr.mxu0 0.0
        %426 = vmatpush2.msra.mxu0 0.0
        %427 = vmatprep.subr.mxu0 0.0
        %428 = vmatpush2.msra.mxu0 0.0
        %429 = vmatprep.subr.mxu0 0.0
        %430 = vmatpush2.msra.mxu0 0.0
        %431 = vmatprep.subr.mxu0 0.0
        %432 = vmatpush2.msra.mxu0 0.0
        %433 = vmatprep.mubr.f32.mxu0 0.0
        %434 = vmatmul.mubr.f32.gmra.mxu0 %v367
        %v435 = vpop.f32.mrf.mxu0
        %v436 = vadd.f32 0.0, %v435
        %v437 = vpop.f32.mrf.mxu0
        %438 = vdwg.mxu0
        %v439 = vlaneseq
        %v440 = vshrl.u32 %v439, 7
        %v441 = vsub.s32 0, %v440
        %v442 = vrot.slane %v436, %v441
        %v443 = vld [vmem:[%s2] sm:$0x1]
        %v445 = vlaneseq
        %v446 = vshrl.u32 %v445, 7
        %v447 = vsub.s32 0, %v446
        %v448 = vrot.slane %v443, %v447
        %v450 = vmul.f32 %v223, %v442
        %v451 = vmul.f32 %v224, %v442
        %v452 = vmul.f32 %v225, %v442
        %v453 = vmul.f32 %v226, %v442
        %v454 = vmul.f32 %v227, %v442
        %v455 = vmul.f32 %v228, %v442
        %v456 = vmul.f32 %v229, %v442
        %v457 = vmul.f32 %v230, %v442
        %v458 = vadd.f32 %v450, %v448
        %v459 = vadd.f32 %v451, %v448
        %v460 = vadd.f32 %v452, %v448
        %v461 = vadd.f32 %v453, %v448
        %v462 = vadd.f32 %v454, %v448
        %v463 = vadd.f32 %v455, %v448
        %v464 = vadd.f32 %v456, %v448
        %v465 = vadd.f32 %v457, %v448
        %466 = vst [vmem:[%s217] sm:$0xff] %v458
        %467 = vst [vmem:[%s217 + $0x8] sm:$0xff] %v459
        %468 = vst [vmem:[%s217 + $0x10] sm:$0xff] %v460
        %469 = vst [vmem:[%s217 + $0x18] sm:$0xff] %v461
        %470 = vst [vmem:[%s217 + $0x20] sm:$0xff] %v462
        %471 = vst [vmem:[%s217 + $0x28] sm:$0xff] %v463
        %472 = vst [vmem:[%s217 + $0x30] sm:$0xff] %v464
        %473 = vst [vmem:[%s217 + $0x38] sm:$0xff] %v465
        %s474 = sand.u32 %s137, 1
        %s475 = scalar_lea.sflag [#allocation3], %s474
        %s476 = sand.u32 %s137, 1
        %s477 = smul.addr %s476, 64
        %s478 = scalar_lea.vmem [#allocation2], %s477
        // Predicated region
        $region41: #{tpu_custom_call.1} parent=39 // pred_check
          %p479 = pneg %p147
        $region42: #{tpu_custom_call.1} parent=39 // pred_check_branch
          %481 = sbr.rel (%p479) target = $region44
        $region43: #{tpu_custom_call.1} parent=39 // pred_region
          %s483 = ssub.s32 1024, 1024
          %484 = vsyncadd %s475, %s483
          %s485 = smul.addr %s19, 8
          %s486 = smul.addr %s485, 128
          %s487 = scalar_lea.hbm %s5, %s486
          %s488 = sshll.u32 %s478, 4
          %s489 = int_to_ptr.vmem [resolvable:$true] %s488
          %494 = dma.vmem_to_hbm [thread:$0]  %s489, 1024, %s487, %s475, 128, 128, 8
        $region44: #{tpu_custom_call.1} parent=39 // pred_fallthru
          _
      $region40: #{tpu_custom_call.1} parent=5 // pred_fallthru
        _
      %p495 = scmp.le.s32.totalorder 2, %s14
      // Predicated region
      $region45: #{tpu_custom_call.1} parent=5 // pred_check
        %p496 = pneg %p495
      $region46: #{tpu_custom_call.1} parent=5 // pred_check_branch
        %498 = sbr.rel (%p496) target = $region48
      $region47: #{tpu_custom_call.1} parent=5 // pred_region
        %s499 = ssub.s32 %s14, 2
        // Predicated region
        $region49: #{tpu_custom_call.1} parent=47 // pred_check
          %p500 = pneg %p153
        $region50: #{tpu_custom_call.1} parent=47 // pred_check_branch
          %502 = sbr.rel (%p500) target = $region52
        $region51: #{tpu_custom_call.1} parent=47 // pred_region
          %s503 = sand.u32 %s138, 1
          %s504 = scalar_lea.sflag [#allocation3], %s503
          %s505 = sand.u32 %s138, 1
          %s506 = smul.addr %s505, 64
          %s507 = scalar_lea.vmem [#allocation2], %s506
          %508 = dma.done %s504, 1024
        $region52: #{tpu_custom_call.1} parent=47 // pred_fallthru
          _
      $region48: #{tpu_custom_call.1} parent=5 // pred_fallthru
        _
    $region6: #{tpu_custom_call.1} parent=1 // loop_footer
      %s18 = sadd.s32 1, %s14
    $region7: #{tpu_custom_call.1} parent=1 // loop_footer_branch
      %13 = sbr.rel target = $region3
    $region8: #{tpu_custom_call.1} parent=1 // loop_exit
      _
    %509 = vsyncpa [#allocation3], 1
    %s510 = scalar_lea.sflag [#allocation3], 1
    %511 = vsyncpa %s510, 1

</llo_original>
